<compile_context>
chip_gen: v5e
topology: v5e:2x2
jax: 0.10.0
libtpu: 0.0.40
codegen_flags: <defaults>
</compile_context>

<pallas_src>
import jax
import jax.numpy as jnp
from jax import lax
from jax.experimental import pallas as pl
from jax.experimental.pallas import tpu as pltpu

PAD_IDX = 0
UNK_IDX = 1


def _round_up(x, m):
    return (x + m - 1) // m * m


# ---------------------------------------------------------------------------
# Kernel A: attention pooling + output linear  ->  hidden (B, D)
# ---------------------------------------------------------------------------
def attention_hidden_kernel(mask_ref, emb_ref, w_ref, v_ref, wog_ref, wol_ref,
                            bo_ref, hid_ref):
    # mask_ref : (bb, T)    f32, 1.0 = real token, 0.0 = pad/unk (lane-dense)
    # emb_ref  : (bb, T, D) compute dtype, raw (un-masked) token embeddings
    # w_ref    : (D, D)     compute dtype, folded additive-attention weight
    # v_ref    : (1, D)     f32 attention scoring vector (row layout)
    # wog/wol  : (D, D)     compute dtype, output linear split (sg / sl parts)
    # bo_ref   : (1, D)     f32 output linear bias
    # hid_ref  : (bb, D)    compute dtype, hidden session representation
    m = mask_ref[...]                                     # (bb, T) f32
    e = emb_ref[...]                                      # (bb, T, D)
    bb, T, D = e.shape

    # Projection matmul on the MXU.  T is padded (wrapper) to a sublane-clean
    # multiple, so this reshape maps 1:1 onto (8,128) tiles -- no relayout.
    # TODO(synk): chunk this over T for very large T*D on v7x (64 MiB VMEM).
    e2 = e.reshape(bb * T, D)
    proj = jnp.tanh(
        lax.dot_general(e2, w_ref[...], (((1,), (1,)), ((), ())),
                        preferred_element_type=jnp.float32))   # (bb*T, D) f32

    # v-score: VPU multiply + lane reduce (kept off the MXU); f32 throughout.
    scores = jnp.sum(proj.reshape(bb, T, D) * v_ref[...], axis=-1)  # (bb, T)

    # Masked softmax over the sequence axis (f32).
    neg_inf = jnp.float32(-1e30)
    scores = jnp.where(m > 0, scores, neg_inf)
    smax = jnp.max(scores, axis=-1, keepdims=True)                  # (bb, 1)
    p = jnp.where(m > 0, jnp.exp(scores - smax), jnp.float32(0.0))  # (bb, T)
    denom = jnp.maximum(jnp.sum(p, axis=-1, keepdims=True), jnp.float32(1e-30))
    attn = p / denom                                                # (bb, T)

    # Global session rep.  attn is exactly 0 at masked positions, so summing
    # un-masked embeddings is identical to masking them first.
    sg = jnp.sum(attn[:, :, None] * e, axis=1)                      # (bb, D) f32

    # Last-item rep: the torch model indexes the *masked* embedding at t = -1.
    sl = e[:, -1, :].astype(jnp.float32) * m[:, -1:]                # (bb, D) f32

    # _out(cat([sg, sl])) without a lane-axis concat; cast MXU operands only.
    cdt = w_ref.dtype
    hidden = (lax.dot_general(sg.astype(cdt), wog_ref[...],
                              (((1,), (1,)), ((), ())),
                              preferred_element_type=jnp.float32)
              + lax.dot_general(sl.astype(cdt), wol_ref[...],
                                (((1,), (1,)), ((), ())),
                                preferred_element_type=jnp.float32)
              + bo_ref[...])                                        # (bb, D)
    hid_ref[...] = hidden.astype(hid_ref.dtype)


# ---------------------------------------------------------------------------
# Kernel B: candidate scoring GEMM  ->  logits (B, N)
# ---------------------------------------------------------------------------
def scoring_kernel(hid_ref, cand_ref, out_ref):
    # hid_ref : (bb, D), cand_ref : (nb, D), out_ref : (bb, nb)
    out_ref[...] = lax.dot_general(
        hid_ref[...], cand_ref[...], (((1,), (1,)), ((), ())),
        preferred_element_type=jnp.float32).astype(out_ref.dtype)


# ---------------------------------------------------------------------------
# Params / wrapper
# ---------------------------------------------------------------------------
def init_params(key, vocab_size, emb_dim):
    ks = jax.random.split(key, 6)
    emb = 0.1 * jax.random.normal(ks[0], (vocab_size, emb_dim), jnp.float32)
    emb = emb.at[PAD_IDX].set(0.0)  # padding_idx=0 row is zeros
    return {
        "emb": emb,
        "wq": 0.1 * jax.random.normal(ks[1], (emb_dim, emb_dim), jnp.float32),
        "wk": 0.1 * jax.random.normal(ks[2], (emb_dim, emb_dim), jnp.float32),
        "v": 0.1 * jax.random.normal(ks[3], (emb_dim, 1), jnp.float32),
        "wo": 0.1 * jax.random.normal(ks[4], (emb_dim, 2 * emb_dim), jnp.float32),
        "bo": 0.1 * jax.random.normal(ks[5], (1, emb_dim), jnp.float32),
    }


def model_forward(text, negatives, params, *, b_blk=128, n_blk=1024,
                  compute_dtype=jnp.bfloat16, out_dtype=jnp.float32):
    # Glue (mask + embedding gathers) stays in plain JAX.
    # TODO(synk): for very large candidate sets, gather candidate rows inside
    # kernel B via PrefetchScalarGridSpec scalar-prefetched ids instead of
    # materializing (N, D) in HBM first.
    B, T = text.shape
    D = params["emb"].shape[1]
    cbytes = jnp.dtype(compute_dtype).itemsize

    # Front-pad T so the in-kernel (bb,T,D)->(bb*T,D) reshape is tile-clean
    # (8 sublanes for f32, 16 for bf16 packing).  Exact: padded positions are
    # masked out and the last item is unchanged.
    sub = 8 * (4 // cbytes)
    T_pad = max(_round_up(T, sub), sub)
    if T_pad != T:
        text = jnp.pad(text, ((0, 0), (T_pad - T, 0)), constant_values=PAD_IDX)
        T = T_pad

    mask = ((text != PAD_IDX) & (text != UNK_IDX)).astype(jnp.float32)   # (B, T)
    embedded = jnp.take(params["emb"], text, axis=0).astype(compute_dtype)
    cand = jnp.take(params["emb"], negatives.reshape(-1), axis=0).astype(
        compute_dtype)                                                   # (N, D)
    N = cand.shape[0]

    # Fold the two attention projections: tanh(e Wq^T + e Wk^T) == tanh(e (Wq+Wk)^T)
    w_att = (params["wq"] + params["wk"]).astype(compute_dtype)   # (D, D)
    v_row = params["v"].reshape(1, D).astype(jnp.float32)         # (1, D)
    wo_g = params["wo"][:, :D].astype(compute_dtype)              # (D, D) acts on sg
    wo_l = params["wo"][:, D:].astype(compute_dtype)              # (D, D) acts on sl
    bo = params["bo"].astype(jnp.float32)                         # (1, D)

    # ---- batch tiling -----------------------------------------------------
    # b_blk: 128 default; 256 is a good choice on v6e (128 MiB VMEM) -- raise
    # the vmem cap below accordingly.
    if B > b_blk:
        bb = _round_up(b_blk, 8)
        B_pad = _round_up(B, bb)
    else:
        bb = B
        B_pad = B
    if B_pad != B:
        mask = jnp.pad(mask, ((0, B_pad - B), (0, 0)))
        embedded = jnp.pad(embedded, ((0, B_pad - B), (0, 0), (0, 0)))

    # ---- kernel A: hidden = out_linear(attention_pool(embedded)) ----------
    vmem_a = (2 * bb * T * D * cbytes            # double-buffered embedded block
              + 2 * bb * T * 4                   # mask
              + 2 * bb * D * cbytes              # hidden out
              + 2 * (3 * D * D * cbytes + 2 * D * 4)   # resident weights/bias
              + 2 * bb * T * D * 4               # f32 tanh/softmax intermediates
              + (4 << 20))                       # headroom
    vmem_a = min(max(int(vmem_a), 16 << 20), 48 << 20)

    hidden = pl.pallas_call(
        attention_hidden_kernel,
        out_shape=jax.ShapeDtypeStruct((B_pad, D), compute_dtype),
        grid_spec=pltpu.PrefetchScalarGridSpec(
            num_scalar_prefetch=0,
            grid=(B_pad // bb,),
            in_specs=[
                pl.BlockSpec((bb, T), lambda i: (i, 0)),        # mask
                pl.BlockSpec((bb, T, D), lambda i: (i, 0, 0)),  # embedded
                pl.BlockSpec((D, D), lambda i: (0, 0)),         # w_att (resident)
                pl.BlockSpec((1, D), lambda i: (0, 0)),         # v
                pl.BlockSpec((D, D), lambda i: (0, 0)),         # wo_g
                pl.BlockSpec((D, D), lambda i: (0, 0)),         # wo_l
                pl.BlockSpec((1, D), lambda i: (0, 0)),         # bo
            ],
            out_specs=pl.BlockSpec((bb, D), lambda i: (i, 0)),
        ),
        compiler_params=pltpu.CompilerParams(
            dimension_semantics=("parallel",),
            vmem_limit_bytes=vmem_a),
    )(mask, embedded, w_att, v_row, wo_g, wo_l, bo)

    # ---- kernel B: logits = hidden @ cand^T (tiled GEMM) -------------------
    nb = _round_up(min(n_blk, _round_up(N, 128)), 128)   # lane-dense output blocks
    N_pad = _round_up(N, nb)
    if N_pad != N:
        cand = jnp.pad(cand, ((0, N_pad - N), (0, 0)))

    vmem_b = (2 * (bb * D * cbytes + nb * D * cbytes)
              + 2 * bb * nb * jnp.dtype(out_dtype).itemsize
              + (2 << 20))
    vmem_b = min(max(int(vmem_b), 16 << 20), 48 << 20)

    # Grid order: candidate blocks on the OUTER axis so the larger cand block
    # stays resident (no re-DMA) across consecutive inner (batch) steps; both
    # axes independent -> "parallel" (megacore sharding on v7x even when the
    # batch fits in one block).
    out = pl.pallas_call(
        scoring_kernel,
        out_shape=jax.ShapeDtypeStruct((B_pad, N_pad), out_dtype),
        grid_spec=pltpu.PrefetchScalarGridSpec(
            num_scalar_prefetch=0,
            grid=(N_pad // nb, B_pad // bb),
            in_specs=[
                pl.BlockSpec((bb, D), lambda j, i: (i, 0)),     # hidden
                pl.BlockSpec((nb, D), lambda j, i: (j, 0)),     # candidates
            ],
            out_specs=pl.BlockSpec((bb, nb), lambda j, i: (i, j)),
        ),
        compiler_params=pltpu.CompilerParams(
            dimension_semantics=("parallel", "parallel"),
            vmem_limit_bytes=vmem_b),
    )(hidden, cand)

    return out[:B, :N]


def model_forward_ref(text, negatives, params):
    # Pure-JAX reference (mirrors the PyTorch forward), f32.
    mask = ((text != PAD_IDX) & (text != UNK_IDX)).astype(jnp.float32)[..., None]
    e = jnp.take(params["emb"], text, axis=0) * mask
    proj = jnp.tanh(e @ params["wq"].T + e @ params["wk"].T)
    scores = proj @ params["v"]
    scores = jnp.where(mask > 0, scores, -1e30)
    smax = jnp.max(scores, axis=1, keepdims=True)
    p = jnp.where(mask > 0, jnp.exp(scores - smax), 0.0)
    attn = p / jnp.maximum(jnp.sum(p, axis=1, keepdims=True), 1e-30)
    sg = jnp.sum(attn * e, axis=1)
    sl = e[:, -1, :]
    hidden = jnp.concatenate([sg, sl], axis=-1) @ params["wo"].T + params["bo"]
    cand = jnp.take(params["emb"], negatives.reshape(-1), axis=0)
    return hidden @ cand.T


if __name__ == "__main__":
    vocab_size, emb_dim = 32, 32
    B, T, n_neg = 2, 8, 4

    key = jax.random.PRNGKey(0)
    kp, kt, kn = jax.random.split(key, 3)
    params = init_params(kp, vocab_size, emb_dim)

    text = jax.random.randint(kt, (B, T), 0, vocab_size, dtype=jnp.int32)
    # make sure some pad/unk tokens appear so the mask path is exercised
    text = text.at[0, 0].set(PAD_IDX).at[1, 1].set(UNK_IDX)
    negatives = jax.random.randint(kn, (B, n_neg), 2, vocab_size, dtype=jnp.int32)

    ref = model_forward_ref(text, negatives, params)

    # Exact (f32) path: tight tolerance.
    out_f32 = model_forward(text, negatives, params, compute_dtype=jnp.float32)
    jax.block_until_ready(out_f32)
    assert out_f32.shape == (B, B * n_neg)
    assert jnp.allclose(out_f32, ref, atol=1e-4, rtol=1e-4)

    # Default (bf16 MXU operands, f32 accumulation) path: loose tolerance.
    out_bf16 = model_forward(text, negatives, params)
    jax.block_until_ready(out_bf16)
    assert out_bf16.shape == (B, B * n_neg)
    assert jnp.allclose(out_bf16, ref, atol=3e-2, rtol=3e-2)

    print("KERNEL_OK")
</pallas_src>

<mosaic_0001>
module attributes {stable_mosaic.version = 11 : i64} {
  func.func @attention_hidden_kernel(%arg0: i32, %arg1: memref<2x8xf32, #tpu.memory_space<vmem>>, %arg2: memref<2x8x32xf32, #tpu.memory_space<vmem>>, %arg3: memref<32x32xf32, #tpu.memory_space<vmem>>, %arg4: memref<1x32xf32, #tpu.memory_space<vmem>>, %arg5: memref<32x32xf32, #tpu.memory_space<vmem>>, %arg6: memref<32x32xf32, #tpu.memory_space<vmem>>, %arg7: memref<1x32xf32, #tpu.memory_space<vmem>>, %arg8: memref<2x32xf32, #tpu.memory_space<vmem>>) attributes {dimension_semantics = [#tpu.dimension_semantics<parallel>], iteration_bounds = array<i64: 1>, scalar_prefetch = 0 : i64, scratch_operands = 0 : i64, tpu.core_type = #tpu.core_type<tc>, window_params = [{transform_indices = @transform_0, window_bounds = array<i64: 2, 8>}, {transform_indices = @transform_1, window_bounds = array<i64: 2, 8, 32>}, {pipeline_mode = #tpu.pipeline_mode<synchronous>, transform_indices = @transform_2, window_bounds = array<i64: 32, 32>}, {pipeline_mode = #tpu.pipeline_mode<synchronous>, transform_indices = @transform_3, window_bounds = array<i64: 1, 32>}, {pipeline_mode = #tpu.pipeline_mode<synchronous>, transform_indices = @transform_4, window_bounds = array<i64: 32, 32>}, {pipeline_mode = #tpu.pipeline_mode<synchronous>, transform_indices = @transform_5, window_bounds = array<i64: 32, 32>}, {pipeline_mode = #tpu.pipeline_mode<synchronous>, transform_indices = @transform_6, window_bounds = array<i64: 1, 32>}, {transform_indices = @transform_7, window_bounds = array<i64: 2, 32>}]} {
    %c0 = arith.constant 0 : index
    %c0_0 = arith.constant 0 : index
    %0 = vector.load %arg1[%c0, %c0_0] : memref<2x8xf32, #tpu.memory_space<vmem>>, vector<2x8xf32>
    %c0_1 = arith.constant 0 : index
    %c0_2 = arith.constant 0 : index
    %c0_3 = arith.constant 0 : index
    %1 = vector.load %arg2[%c0_1, %c0_2, %c0_3] : memref<2x8x32xf32, #tpu.memory_space<vmem>>, vector<2x8x32xf32>
    %2 = vector.shape_cast %1 : vector<2x8x32xf32> to vector<16x32xf32>
    %c0_4 = arith.constant 0 : index
    %c0_5 = arith.constant 0 : index
    %3 = vector.load %arg3[%c0_4, %c0_5] : memref<32x32xf32, #tpu.memory_space<vmem>>, vector<32x32xf32>
    %cst = arith.constant dense<0.000000e+00> : vector<16x32xf32>
    %4 = tpu.matmul %2, %3, %cst {dimension_numbers = #tpu.dot_dimension_numbers<[1], [1], [0], [0], [0, 0, 1, 0], [], []>} : vector<16x32xf32>, vector<32x32xf32>, vector<16x32xf32> -> vector<16x32xf32>
    %5 = math.tanh %4 : vector<16x32xf32>
    %6 = vector.shape_cast %5 : vector<16x32xf32> to vector<2x8x32xf32>
    %c0_6 = arith.constant 0 : index
    %c0_7 = arith.constant 0 : index
    %7 = vector.load %arg4[%c0_6, %c0_7] : memref<1x32xf32, #tpu.memory_space<vmem>>, vector<1x32xf32>
    %8 = vector.shape_cast %7 : vector<1x32xf32> to vector<1x1x32xf32>
    %9 = vector.broadcast %8 : vector<1x1x32xf32> to vector<2x8x32xf32>
    %10 = arith.mulf %6, %9 : vector<2x8x32xf32>
    %cst_8 = arith.constant dense<0.000000e+00> : vector<2x8xf32>
    %11 = vector.multi_reduction <add>, %10, %cst_8 [2] : vector<2x8x32xf32> to vector<2x8xf32>
    %cst_9 = arith.constant 0.000000e+00 : f32
    %12 = vector.broadcast %cst_9 : f32 to vector<2x8xf32>
    %13 = arith.cmpf ogt, %0, %12 : vector<2x8xf32>
    %cst_10 = arith.constant -1.000000e+30 : f32
    %14 = vector.broadcast %cst_10 : f32 to vector<2x8xf32>
    %15 = arith.select %13, %11, %14 : vector<2x8xi1>, vector<2x8xf32>
    %cst_11 = arith.constant dense<0xFF800000> : vector<2xf32>
    %16 = vector.multi_reduction <maximumf>, %15, %cst_11 [1] : vector<2x8xf32> to vector<2xf32>
    %17 = vector.shape_cast %16 : vector<2xf32> to vector<2x1xf32>
    %cst_12 = arith.constant 0.000000e+00 : f32
    %18 = vector.broadcast %cst_12 : f32 to vector<2x8xf32>
    %19 = arith.cmpf ogt, %0, %18 : vector<2x8xf32>
    %20 = vector.broadcast %17 : vector<2x1xf32> to vector<2x8xf32>
    %21 = arith.subf %15, %20 : vector<2x8xf32>
    %22 = math.exp %21 : vector<2x8xf32>
    %cst_13 = arith.constant 0.000000e+00 : f32
    %23 = vector.broadcast %cst_13 : f32 to vector<2x8xf32>
    %24 = arith.select %19, %22, %23 : vector<2x8xi1>, vector<2x8xf32>
    %cst_14 = arith.constant dense<0.000000e+00> : vector<2xf32>
    %25 = vector.multi_reduction <add>, %24, %cst_14 [1] : vector<2x8xf32> to vector<2xf32>
    %26 = vector.shape_cast %25 : vector<2xf32> to vector<2x1xf32>
    %cst_15 = arith.constant 1.000000e-30 : f32
    %27 = vector.broadcast %cst_15 : f32 to vector<2x1xf32>
    %28 = arith.maximumf %26, %27 : vector<2x1xf32>
    %29 = vector.broadcast %28 : vector<2x1xf32> to vector<2x8xf32>
    %30 = arith.divf %24, %29 : vector<2x8xf32>
    %31 = vector.shape_cast %30 : vector<2x8xf32> to vector<2x8x1xf32>
    %32 = vector.broadcast %31 : vector<2x8x1xf32> to vector<2x8x32xf32>
    %33 = arith.mulf %32, %1 : vector<2x8x32xf32>
    %cst_16 = arith.constant dense<0.000000e+00> : vector<2x32xf32>
    %34 = vector.multi_reduction <add>, %33, %cst_16 [1] : vector<2x8x32xf32> to vector<2x32xf32>
    %35 = vector.extract_strided_slice %1 {offsets = [0, 7, 0], sizes = [2, 1, 32], strides = [1, 1, 1]} : vector<2x8x32xf32> to vector<2x1x32xf32>
    %36 = vector.shape_cast %35 : vector<2x1x32xf32> to vector<2x32xf32>
    %37 = vector.extract_strided_slice %0 {offsets = [0, 7], sizes = [2, 1], strides = [1, 1]} : vector<2x8xf32> to vector<2x1xf32>
    %38 = vector.broadcast %37 : vector<2x1xf32> to vector<2x32xf32>
    %39 = arith.mulf %36, %38 : vector<2x32xf32>
    %c0_17 = arith.constant 0 : index
    %c0_18 = arith.constant 0 : index
    %40 = vector.load %arg5[%c0_17, %c0_18] : memref<32x32xf32, #tpu.memory_space<vmem>>, vector<32x32xf32>
    %cst_19 = arith.constant dense<0.000000e+00> : vector<2x32xf32>
    %41 = tpu.matmul %34, %40, %cst_19 {dimension_numbers = #tpu.dot_dimension_numbers<[1], [1], [0], [0], [0, 0, 1, 0], [], []>} : vector<2x32xf32>, vector<32x32xf32>, vector<2x32xf32> -> vector<2x32xf32>
    %c0_20 = arith.constant 0 : index
    %c0_21 = arith.constant 0 : index
    %42 = vector.load %arg6[%c0_20, %c0_21] : memref<32x32xf32, #tpu.memory_space<vmem>>, vector<32x32xf32>
    %cst_22 = arith.constant dense<0.000000e+00> : vector<2x32xf32>
    %43 = tpu.matmul %39, %42, %cst_22 {dimension_numbers = #tpu.dot_dimension_numbers<[1], [1], [0], [0], [0, 0, 1, 0], [], []>} : vector<2x32xf32>, vector<32x32xf32>, vector<2x32xf32> -> vector<2x32xf32>
    %44 = arith.addf %41, %43 : vector<2x32xf32>
    %c0_23 = arith.constant 0 : index
    %c0_24 = arith.constant 0 : index
    %45 = vector.load %arg7[%c0_23, %c0_24] : memref<1x32xf32, #tpu.memory_space<vmem>>, vector<1x32xf32>
    %46 = vector.broadcast %45 : vector<1x32xf32> to vector<2x32xf32>
    %47 = arith.addf %44, %46 : vector<2x32xf32>
    %c0_25 = arith.constant 0 : index
    %c0_26 = arith.constant 0 : index
    %48 = vector.load %arg8[%c0_25, %c0_26] : memref<2x32xf32, #tpu.memory_space<vmem>>, vector<2x32xf32>
    tpu.vector_store %arg8[%c0_25, %c0_26], %47 {strides = array<i32>} : memref<2x32xf32, #tpu.memory_space<vmem>>, vector<2x32xf32>,
    return
  }
  func.func @transform_0(%arg0: i32) -> (i32, i32) {
    %c0_i32 = arith.constant 0 : i32
    %c0_i32_0 = arith.constant 0 : i32
    return %arg0, %c0_i32 : i32, i32
  }
  func.func @transform_1(%arg0: i32) -> (i32, i32, i32) {
    %c0_i32 = arith.constant 0 : i32
    %c0_i32_0 = arith.constant 0 : i32
    %c0_i32_1 = arith.constant 0 : i32
    return %arg0, %c0_i32, %c0_i32_0 : i32, i32, i32
  }
  func.func @transform_2(%arg0: i32) -> (i32, i32) {
    %c0_i32 = arith.constant 0 : i32
    %c0_i32_0 = arith.constant 0 : i32
    %c0_i32_1 = arith.constant 0 : i32
    return %c0_i32, %c0_i32_0 : i32, i32
  }
  func.func @transform_3(%arg0: i32) -> (i32, i32) {
    %c0_i32 = arith.constant 0 : i32
    %c0_i32_0 = arith.constant 0 : i32
    %c0_i32_1 = arith.constant 0 : i32
    return %c0_i32, %c0_i32_0 : i32, i32
  }
  func.func @transform_4(%arg0: i32) -> (i32, i32) {
    %c0_i32 = arith.constant 0 : i32
    %c0_i32_0 = arith.constant 0 : i32
    %c0_i32_1 = arith.constant 0 : i32
    return %c0_i32, %c0_i32_0 : i32, i32
  }
  func.func @transform_5(%arg0: i32) -> (i32, i32) {
    %c0_i32 = arith.constant 0 : i32
    %c0_i32_0 = arith.constant 0 : i32
    %c0_i32_1 = arith.constant 0 : i32
    return %c0_i32, %c0_i32_0 : i32, i32
  }
  func.func @transform_6(%arg0: i32) -> (i32, i32) {
    %c0_i32 = arith.constant 0 : i32
    %c0_i32_0 = arith.constant 0 : i32
    %c0_i32_1 = arith.constant 0 : i32
    return %c0_i32, %c0_i32_0 : i32, i32
  }
  func.func @transform_7(%arg0: i32) -> (i32, i32) {
    %c0_i32 = arith.constant 0 : i32
    %c0_i32_0 = arith.constant 0 : i32
    return %arg0, %c0_i32 : i32, i32
  }
}

</mosaic_0001>

<llo_original>
// kernel: tpu_custom_call.1
$region0: #{tpu_custom_call.1}
  #allocation0 [shape = 'u32[]', space=smem, size = 0x4, offset = 0x4, fixed_abs, tag = 'smem constant byte address 0x4 - core index']
  #allocation1 [shape = 'u32[72,128]{1,0:T(1,128)}', space=vmem, size = 0x9000, scoped, tag = 'internal scratch']
  %s0 = inlined_call_operand.hbm [shape: f32[2,8], index: 0, kind: input, shape index: {}]
  %s1 = inlined_call_operand.hbm [shape: f32[2,8,32], index: 1, kind: input, shape index: {}]
  %s2 = inlined_call_operand.hbm [shape: f32[32,32], index: 2, kind: input, shape index: {}]
  %s3 = inlined_call_operand.vmem [shape: f32[1,32], index: 3, kind: input, shape index: {}]
  %s4 = inlined_call_operand.hbm [shape: f32[32,32], index: 4, kind: input, shape index: {}]
  %s5 = inlined_call_operand.hbm [shape: f32[32,32], index: 5, kind: input, shape index: {}]
  %s6 = inlined_call_operand.vmem [shape: f32[1,32], index: 6, kind: input, shape index: {}]
  %s7 = inlined_call_operand.hbm [shape: f32[2,32], index: 7, kind: output, shape index: {}]
  %s8 = sld [smem:[#allocation0]]
  $region58: #{tpu_custom_call.1} parent=0
    _
  %s10 = ssub.s32 1, %s8
  %s11 = scalar_select 0, %s10, %s8
  $region1: #{tpu_custom_call.1} parent=0
    #allocation2 [shape = 'u8[1024]{0}', space=vmem, size = 0x400, scoped, tag = 'input window, operand 0, single buffered']
    #allocation3 [shape = 's32[1]{0}', space=sflag, size = 0x4, scoped, tag = 'scoped memory for tpu_custom_call.1']
    #allocation4 [shape = 's32[1]{0}', space=sflag, size = 0x4, scoped, tag = 'scoped memory for tpu_custom_call.1']
    #allocation5 [shape = 'u8[8192]{0}', space=vmem, size = 0x2000, scoped, tag = 'input window, operand 1, single buffered']
    #allocation6 [shape = 's32[1]{0}', space=sflag, size = 0x4, scoped, tag = 'scoped memory for tpu_custom_call.1']
    #allocation7 [shape = 'u8[16384]{0}', space=vmem, size = 0x4000, scoped, tag = 'input window, operand 2, single buffered']
    #allocation8 [shape = 'u8[16384]{0}', space=vmem, size = 0x4000, scoped, tag = 'input window, operand 4, single buffered']
    #allocation9 [shape = 's32[1]{0}', space=sflag, size = 0x4, scoped, tag = 'scoped memory for tpu_custom_call.1']
    #allocation10 [shape = 'u8[16384]{0}', space=vmem, size = 0x4000, scoped, tag = 'input window, operand 5, single buffered']
    #allocation11 [shape = 'u8[1024]{0}', space=vmem, size = 0x400, scoped, tag = 'output window, operand 0, single buffered']
    %12 = vsyncpa [#allocation3], 0
    %13 = vsyncpa [#allocation6], 0
    %14 = vsyncpa [#allocation9], 0
    %15 = vsyncpa [#allocation4], 0
    // Predicated region
    $region2: #{tpu_custom_call.1} parent=1 // pred_check
      _
    $region3: #{tpu_custom_call.1} parent=1 // pred_check_branch
      %17 = sbr.rel (0) target = $region5
    $region4: #{tpu_custom_call.1} parent=1 // pred_region
      %19 = vsyncadd [#allocation3], 0
      %s21 = sshll.u32 %s0, 4
      %s22 = int_to_ptr.hbm [resolvable:$true] %s21
      %s23 = sshll.u32 [#allocation2], 4
      %s24 = int_to_ptr.vmem [resolvable:$true] %s23
      %26 = dma.hbm_to_vmem [thread:$0]  %s22, 32, %s24, [#allocation3]
    $region5: #{tpu_custom_call.1} parent=1 // pred_fallthru
      _
    // Predicated region
    $region6: #{tpu_custom_call.1} parent=1 // pred_check
      _
    $region7: #{tpu_custom_call.1} parent=1 // pred_check_branch
      %28 = sbr.rel (0) target = $region9
    $region8: #{tpu_custom_call.1} parent=1 // pred_region
      %30 = vsyncadd [#allocation6], 0
      %s31 = sshll.u32 %s1, 4
      %s32 = int_to_ptr.hbm [resolvable:$true] %s31
      %s33 = sshll.u32 [#allocation5], 4
      %s34 = int_to_ptr.vmem [resolvable:$true] %s33
      %39 = dma.hbm_to_vmem [thread:$0]  %s32, 256, %s34, [#allocation6], 128, 128, 8
    $region9: #{tpu_custom_call.1} parent=1 // pred_fallthru
      _
    // Predicated region
    $region10: #{tpu_custom_call.1} parent=1 // pred_check
      _
    $region11: #{tpu_custom_call.1} parent=1 // pred_check_branch
      %41 = sbr.rel (0) target = $region13
    $region12: #{tpu_custom_call.1} parent=1 // pred_region
      %43 = vsyncadd [#allocation6], 0
      %s44 = sshll.u32 %s2, 4
      %s45 = int_to_ptr.hbm [resolvable:$true] %s44
      %s46 = sshll.u32 [#allocation7], 4
      %s47 = int_to_ptr.vmem [resolvable:$true] %s46
      %52 = dma.hbm_to_vmem [thread:$0]  %s45, 512, %s47, [#allocation6], 128, 128, 8
    $region13: #{tpu_custom_call.1} parent=1 // pred_fallthru
      _
    // Predicated region
    $region14: #{tpu_custom_call.1} parent=1 // pred_check
      _
    $region15: #{tpu_custom_call.1} parent=1 // pred_check_branch
      %54 = sbr.rel (0) target = $region17
    $region16: #{tpu_custom_call.1} parent=1 // pred_region
      _
    $region17: #{tpu_custom_call.1} parent=1 // pred_fallthru
      _
    // Predicated region
    $region18: #{tpu_custom_call.1} parent=1 // pred_check
      _
    $region19: #{tpu_custom_call.1} parent=1 // pred_check_branch
      %56 = sbr.rel (0) target = $region21
    $region20: #{tpu_custom_call.1} parent=1 // pred_region
      %58 = vsyncadd [#allocation9], 0
      %s59 = sshll.u32 %s4, 4
      %s60 = int_to_ptr.hbm [resolvable:$true] %s59
      %s61 = sshll.u32 [#allocation8], 4
      %s62 = int_to_ptr.vmem [resolvable:$true] %s61
      %67 = dma.hbm_to_vmem [thread:$0]  %s60, 512, %s62, [#allocation9], 128, 128, 8
    $region21: #{tpu_custom_call.1} parent=1 // pred_fallthru
      _
    // Predicated region
    $region22: #{tpu_custom_call.1} parent=1 // pred_check
      _
    $region23: #{tpu_custom_call.1} parent=1 // pred_check_branch
      %69 = sbr.rel (0) target = $region25
    $region24: #{tpu_custom_call.1} parent=1 // pred_region
      %71 = vsyncadd [#allocation9], 0
      %s72 = sshll.u32 %s5, 4
      %s73 = int_to_ptr.hbm [resolvable:$true] %s72
      %s74 = sshll.u32 [#allocation10], 4
      %s75 = int_to_ptr.vmem [resolvable:$true] %s74
      %80 = dma.hbm_to_vmem [thread:$0]  %s73, 512, %s75, [#allocation9], 128, 128, 8
    $region25: #{tpu_custom_call.1} parent=1 // pred_fallthru
      _
    // Predicated region
    $region26: #{tpu_custom_call.1} parent=1 // pred_check
      _
    $region27: #{tpu_custom_call.1} parent=1 // pred_check_branch
      %82 = sbr.rel (0) target = $region29
    $region28: #{tpu_custom_call.1} parent=1 // pred_region
      _
    $region29: #{tpu_custom_call.1} parent=1 // pred_fallthru
      _
    // Predicated region
    $region30: #{tpu_custom_call.1} parent=1 // pred_check
      _
    $region31: #{tpu_custom_call.1} parent=1 // pred_check_branch
      %84 = sbr.rel (0) target = $region33
    $region32: #{tpu_custom_call.1} parent=1 // pred_region
      %86 = dma.done [#allocation3], 32
    $region33: #{tpu_custom_call.1} parent=1 // pred_fallthru
      _
    // Predicated region
    $region34: #{tpu_custom_call.1} parent=1 // pred_check
      _
    $region35: #{tpu_custom_call.1} parent=1 // pred_check_branch
      %88 = sbr.rel (0) target = $region37
    $region36: #{tpu_custom_call.1} parent=1 // pred_region
      %90 = dma.done [#allocation6], 256
    $region37: #{tpu_custom_call.1} parent=1 // pred_fallthru
      _
    // Predicated region
    $region38: #{tpu_custom_call.1} parent=1 // pred_check
      _
    $region39: #{tpu_custom_call.1} parent=1 // pred_check_branch
      %92 = sbr.rel (0) target = $region41
    $region40: #{tpu_custom_call.1} parent=1 // pred_region
      %94 = dma.done [#allocation6], 512
    $region41: #{tpu_custom_call.1} parent=1 // pred_fallthru
      _
    // Predicated region
    $region42: #{tpu_custom_call.1} parent=1 // pred_check
      _
    $region43: #{tpu_custom_call.1} parent=1 // pred_check_branch
      %96 = sbr.rel (0) target = $region45
    $region44: #{tpu_custom_call.1} parent=1 // pred_region
      %98 = dma.done [#allocation9], 512
    $region45: #{tpu_custom_call.1} parent=1 // pred_fallthru
      _
    // Predicated region
    $region46: #{tpu_custom_call.1} parent=1 // pred_check
      _
    $region47: #{tpu_custom_call.1} parent=1 // pred_check_branch
      %100 = sbr.rel (0) target = $region49
    $region48: #{tpu_custom_call.1} parent=1 // pred_region
      %102 = dma.done [#allocation9], 512
    $region49: #{tpu_custom_call.1} parent=1 // pred_fallthru
      _
    %v103 = vld [vmem:[#allocation2] sm:$0x3]
    %v104 = vld [vmem:[#allocation5] sm:$0xff]
    %v105 = vld [vmem:[#allocation5 + $0x8] sm:$0xff]
    %v106 = vld [vmem:[#allocation7] sm:$0xff]
    %v107 = vld [vmem:[#allocation7 + $0x8] sm:$0xff]
    %v108 = vld [vmem:[#allocation7 + $0x10] sm:$0xff]
    %v109 = vld [vmem:[#allocation7 + $0x18] sm:$0xff]
    %vm110 = vcmask 261120
    %v112 = vsel %vm110, %v104, 0
    %v115 = vsel %vm110, %v105, 0
    %v118 = vsel %vm110, %v106, 0
    %v121 = vsel %vm110, %v107, 0
    %v124 = vsel %vm110, %v108, 0
    %v127 = vsel %vm110, %v109, 0
    %129 = vmatpush.xpose.msra.mxu0 0.0
    %130 = vmatpush.xpose.msra.mxu0 0.0
    %131 = vmatpush.xpose.msra.mxu0 0.0
    %132 = vmatpush.xpose.msra.mxu0 0.0
    %133 = vmatpush.xpose.msra.mxu0 0.0
    %134 = vmatpush.xpose.msra.mxu0 0.0
    %135 = vmatpush.xpose.msra.mxu0 0.0
    %136 = vmatpush.xpose.msra.mxu0 0.0
    %137 = vmatpush.xpose.msra.mxu0 0.0
    %138 = vmatpush.xpose.msra.mxu0 0.0
    %139 = vmatpush.xpose.msra.mxu0 0.0
    %140 = vmatpush.xpose.msra.mxu0 0.0
    %141 = vmatpush.xpose.msra.mxu0 %v127
    %142 = vmatpush.xpose.msra.mxu0 %v124
    %143 = vmatpush.xpose.msra.mxu0 %v121
    %144 = vmatpush.xpose.msra.mxu0 %v118
    %145 = vmatmul.f32.gmra.mxu0 %v112
    %v146 = vpop.f32.mrf.mxu0
    %v147 = vadd.f32 0.0, %v146
    %148 = vmatmul.f32.gmra.mxu0 %v115
    %v149 = vpop.f32.mrf.mxu0
    %v150 = vadd.f32 0.0, %v149
    %151 = vdwg.mxu0
    %v152 = vtanh.pop %v147
    %v153 = vtanh.pop %v150
    %v154 = vld [vmem:[%s3] sm:$0x1]
    %v156 = vperm.slane %v154, 0
    %v158 = vmul.f32 %v152, %v156
    %v159 = vmul.f32 %v153, %v156
    %v160 = vsel %vm110, %v158, 0.0
    %161 = vadd.xlane.f32.xlu0 %v160
    %v162 = vpop.xlane.xlu0 %161
    %v163 = vsel %vm110, %v159, 0.0
    %164 = vadd.xlane.f32.xlu0 %v163
    %v165 = vpop.xlane.xlu0 %164
    %vm166 = vcmp.gt.f32.partialorder %v103, 0.0
    %v169 = vlaneseq
    %v170 = vand.u32 %v169, 127
    %v171 = vperm.slane %v162, %v170
    %v172 = vperm.slane %v165, %v170
    %vm173 = vcmask 1041409
    %v174 = vsel %vm173, %v172, %v171
    %v176 = vsel %vm166, %v174, -1e+30
    %vm177 = vcmask 58368
    %v178 = vsel %vm177, %v176, -inf
    %179 = vmax.xlane.f32.xlu0 %v178
    %v180 = vpop.xlane.xlu0 %179
    %v181 = vsub.f32 %v176, %v180
    %v182 = vmul.f32 %v181, 1.442695
    %v183 = vpow.pop %v182
    %v184 = vsel %vm166, %v183, 0.0
    %v185 = vsel %vm177, %v184, 0.0
    %186 = vadd.xlane.f32.xlu0 %v185
    %v187 = vpop.xlane.xlu0 %186
    %v188 = vmax.f32 %v187, 1e-30
    %v189 = vrcp.pop %v188
    %v190 = vmul.f32 %v188, %v189
    %v191 = vsub.f32 1.0, %v190
    %v192 = vmul.f32 %v189, %v191
    %v193 = vadd.f32 %v189, %v192
    %vm194 = vweird.f32 %v188
    %vm195 = vweird.f32 %v189
    %vm196 = vmor %vm194, %vm195
    %v197 = vsel %vm196, %v189, %v193
    %v198 = vand.u32 2147483647, %v188
    %vm199 = vcmp.eq.f32.partialorder %v198, 8.507059e+37
    %v200 = vand.u32 %v188, 2147483648
    %v201 = vor.u32 1.1754944e-38, %v200
    %v202 = vsel %vm199, %v201, %v197
    %v203 = vmul.f32 %v184, %v202
    %v204 = vperm.slane %v203, 0
    %v205 = vlaneseq
    %v206 = vshrl.u32 %v205, 7
    %208 = vset.pattern.permute.xlu0 %v206
    %209 = vperm.xlu0 %208, %v204
    %v210 = vpop.permute.xlu0 %209
    %v211 = vperm.slane %v203, 1
    %v212 = vlaneseq
    %v213 = vshrl.u32 %v212, 7
    %215 = vset.pattern.permute.xlu0 %v213
    %216 = vperm.xlu0 %215, %v211
    %v217 = vpop.permute.xlu0 %216
    %v218 = vmul.f32 %v210, %v104
    %v219 = vmul.f32 %v217, %v105
    %v220 = vsel %vm110, %v218, 0.0
    %v221 = vrot.slane %v220, 4
    %v222 = vadd.f32 %v220, %v221
    %v223 = vrot.slane %v222, 2
    %v224 = vadd.f32 %v222, %v223
    %v225 = vrot.slane %v224, 1
    %v226 = vadd.f32 %v224, %v225
    %v227 = vsel %vm110, %v219, 0.0
    %v228 = vrot.slane %v227, 4
    %v229 = vadd.f32 %v227, %v228
    %v230 = vrot.slane %v229, 2
    %v231 = vadd.f32 %v229, %v230
    %v232 = vrot.slane %v231, 1
    %v233 = vadd.f32 %v231, %v232
    %235 = vset.pattern.permute.xlu0 7
    %236 = vperm.xlu0 %235, %v103
    %v237 = vpop.permute.xlu0 %236
    %v238 = vrot.slane %v237, 1
    %v239 = vrot.slane %v237, 2
    %v242 = vmul.f32 %v104, %v238
    %v243 = vmul.f32 %v105, %v239
    %v244 = vld [vmem:[#allocation8] sm:$0xff]
    %v245 = vld [vmem:[#allocation8 + $0x8] sm:$0xff]
    %v246 = vld [vmem:[#allocation8 + $0x10] sm:$0xff]
    %v247 = vld [vmem:[#allocation8 + $0x18] sm:$0xff]
    %v248 = vld [vmem:[#allocation10] sm:$0xff]
    %v249 = vld [vmem:[#allocation10 + $0x8] sm:$0xff]
    %v250 = vld [vmem:[#allocation10 + $0x10] sm:$0xff]
    %v251 = vld [vmem:[#allocation10 + $0x18] sm:$0xff]
    %v254 = vrot.slane %v242, 7
    %v255 = vrot.slane %v243, 6
    %v256 = vsel %vm173, %v255, %v254
    %v257 = vsel %vm110, %v256, 0
    %v260 = vsel %vm110, %v248, 0
    %v263 = vsel %vm110, %v249, 0
    %v266 = vsel %vm110, %v250, 0
    %v269 = vsel %vm110, %v251, 0
    %271 = vmatpush.xpose.msra.mxu0 0.0
    %272 = vmatpush.xpose.msra.mxu0 0.0
    %273 = vmatpush.xpose.msra.mxu0 0.0
    %274 = vmatpush.xpose.msra.mxu0 0.0
    %275 = vmatpush.xpose.msra.mxu0 0.0
    %276 = vmatpush.xpose.msra.mxu0 0.0
    %277 = vmatpush.xpose.msra.mxu0 0.0
    %278 = vmatpush.xpose.msra.mxu0 0.0
    %279 = vmatpush.xpose.msra.mxu0 0.0
    %280 = vmatpush.xpose.msra.mxu0 0.0
    %281 = vmatpush.xpose.msra.mxu0 0.0
    %282 = vmatpush.xpose.msra.mxu0 0.0
    %283 = vmatpush.xpose.msra.mxu0 %v269
    %284 = vmatpush.xpose.msra.mxu0 %v266
    %285 = vmatpush.xpose.msra.mxu0 %v263
    %286 = vmatpush.xpose.msra.mxu0 %v260
    %287 = vmatmul.f32.gmra.mxu0 %v257
    %v288 = vpop.f32.mrf.mxu0
    %v289 = vadd.f32 0.0, %v288
    %290 = vdwg.mxu0
    %v293 = vsel %vm173, %v233, %v226
    %v294 = vsel %vm110, %v293, 0
    %v297 = vsel %vm110, %v244, 0
    %v300 = vsel %vm110, %v245, 0
    %v303 = vsel %vm110, %v246, 0
    %v306 = vsel %vm110, %v247, 0
    %308 = vmatpush.xpose.msra.mxu0 0.0
    %309 = vmatpush.xpose.msra.mxu0 0.0
    %310 = vmatpush.xpose.msra.mxu0 0.0
    %311 = vmatpush.xpose.msra.mxu0 0.0
    %312 = vmatpush.xpose.msra.mxu0 0.0
    %313 = vmatpush.xpose.msra.mxu0 0.0
    %314 = vmatpush.xpose.msra.mxu0 0.0
    %315 = vmatpush.xpose.msra.mxu0 0.0
    %316 = vmatpush.xpose.msra.mxu0 0.0
    %317 = vmatpush.xpose.msra.mxu0 0.0
    %318 = vmatpush.xpose.msra.mxu0 0.0
    %319 = vmatpush.xpose.msra.mxu0 0.0
    %320 = vmatpush.xpose.msra.mxu0 %v306
    %321 = vmatpush.xpose.msra.mxu0 %v303
    %322 = vmatpush.xpose.msra.mxu0 %v300
    %323 = vmatpush.xpose.msra.mxu0 %v297
    %324 = vmatmul.f32.gmra.mxu0 %v294
    %v325 = vpop.f32.mrf.mxu0
    %v326 = vadd.f32 %v289, %v325
    %327 = vdwg.mxu0
    %v328 = vld [vmem:[%s6] sm:$0x1]
    %v330 = vperm.slane %v328, 0
    %v332 = vadd.f32 %v326, %v330
    %vm333 = vcmask 254976
    %334 = vst.msk [vmem:[#allocation11] sm:$0x3] %vm333, %v332
    // Predicated region
    $region50: #{tpu_custom_call.1} parent=1 // pred_check
      _
    $region51: #{tpu_custom_call.1} parent=1 // pred_check_branch
      %336 = sbr.rel (0) target = $region53
    $region52: #{tpu_custom_call.1} parent=1 // pred_region
      %338 = vsyncadd [#allocation4], 0
      %s340 = sshll.u32 [#allocation11], 4
      %s341 = int_to_ptr.vmem [resolvable:$true] %s340
      %s342 = sshll.u32 %s7, 4
      %s343 = int_to_ptr.hbm [resolvable:$true] %s342
      %345 = dma.vmem_to_hbm [thread:$0]  %s341, 32, %s343, [#allocation4]
    $region53: #{tpu_custom_call.1} parent=1 // pred_fallthru
      _
    // Predicated region
    $region54: #{tpu_custom_call.1} parent=1 // pred_check
      _
    $region55: #{tpu_custom_call.1} parent=1 // pred_check_branch
      %347 = sbr.rel (0) target = $region57
    $region56: #{tpu_custom_call.1} parent=1 // pred_region
      %349 = dma.done [#allocation4], 32
    $region57: #{tpu_custom_call.1} parent=1 // pred_fallthru
      _
    %350 = vsyncpa [#allocation3], 1
    %351 = vsyncpa [#allocation6], 1
    %352 = vsyncpa [#allocation9], 1
    %353 = vsyncpa [#allocation4], 1

</llo_original>
